<compile_context>
chip_gen: v5e
topology: v5e:2x2
jax: 0.10.0
libtpu: 0.0.40
codegen_flags: <defaults>
</compile_context>

<pallas_src>
import jax
import jax.numpy as jnp
from jax.experimental import pallas as pl
from jax.experimental.pallas import tpu as pltpu


def _round_up(n, m):
    return (n + m - 1) // m * m


def _cdiv(a, b):
    return -(-a // b)


def _pad_to(a, shape):
    """Zero-pad `a` up to `shape`, skipping the copy when it is a no-op."""
    if tuple(a.shape) == tuple(shape):
        return a
    return jnp.pad(a, [(0, s - d) for d, s in zip(a.shape, shape)])


def ffn_kernel(x_ref, w1_ref, b1_ref, w2_ref, b2_ref, w2cs_ref, aff_ref,
               o_ref, acc_ref):
    """One (row-tile, H-chunk) grid step.

    x_ref:    (tm, Dp)  bf16 activation row tile
    w1_ref:   (Dp, hk)  bf16 W1^T column chunk
    b1_ref:   (1, hk)   f32 lr1 bias chunk
    w2_ref:   (hk, Dp)  bf16 W2^T row chunk
    b2_ref:   (1, Dp)   f32 lr2 bias
    w2cs_ref: (1, Dp)   f32 colsum(W2) (hoisted BN shift term)
    aff_ref:  (tm, 2)   f32 packed per-row BN affine [scale | shift]
    o_ref:    (tm, Dp)  output row tile
    acc_ref:  (tm, Dp)  f32 accumulator scratch across H chunks
    """
    k = pl.program_id(1)

    @pl.when(k == 0)
    def _():
        acc_ref[...] = jnp.zeros_like(acc_ref)

    # lr1 chunk: bf16 MXU operands, f32 accumulation; bias + ReLU in f32 (VPU).
    h = jnp.dot(x_ref[...], w1_ref[...], preferred_element_type=jnp.float32)
    h = jnp.maximum(h + b1_ref[...], 0.0)
    # lr2 chunk, accumulated over H chunks.
    acc_ref[...] += jnp.dot(h.astype(jnp.bfloat16), w2_ref[...],
                            preferred_element_type=jnp.float32)

    @pl.when(k == pl.num_programs(1) - 1)
    def _():
        # Hoisted eval-mode BatchNorm affine + lr2 bias:
        #   y = s * (relu(x W1 + b1) @ W2) + t * colsum(W2) + b2
        s = aff_ref[:, 0:1]
        t = aff_ref[:, 1:2]
        y = s * acc_ref[...] + t * w2cs_ref[...] + b2_ref[...]
        o_ref[...] = y.astype(o_ref.dtype)


def ffn_forward(x, w1t, b1, w2t, b2, bn_scale, bn_shift,
                *, row_tile=None, out_dtype=None, max_h_chunk=None):
    """Eval-mode FFN forward.

    Args:
      x:        (B, L, D) activations.
      w1t:      (D, H)  == lr1.weight.T
      b1:       (H,)
      w2t:      (H, D)  == lr2.weight.T
      b2:       (D,)
      bn_scale: (L,)  gamma / sqrt(running_var + eps)
      bn_shift: (L,)  beta - running_mean * bn_scale
      max_h_chunk: optional cap on the hidden-dim chunk size (multiple of 128);
        mainly for testing the H-tiled accumulation path.
    """
    B, L, D = x.shape
    H = w1t.shape[1]
    assert w1t.shape == (D, H) and w2t.shape == (H, D)
    assert b1.shape == (H,) and b2.shape == (D,)
    assert bn_scale.shape == (L,) and bn_shift.shape == (L,)
    out_dtype = out_dtype or x.dtype
    out_itemsize = jnp.dtype(out_dtype).itemsize

    # Generation-aware VMEM budget (~80% of physical); conservative fallback.
    try:
        phys_vmem = int(pltpu.get_tpu_info().vmem_capacity_bytes)
    except Exception:
        phys_vmem = 64 * 1024 * 1024
    vmem_limit = max(32 * 1024 * 1024, int(phys_vmem * 4 // 5))

    # Bigger row tiles on 128 MiB parts (v5e/v6e); 512 on v7x (64 MiB, 2 TCs).
    if row_tile is None:
        row_tile = 1024 if phys_vmem >= 96 * 1024 * 1024 else 512

    # Flatten (B, L) -> M rows.  Balance row tiles to minimize padding and aim
    # for >= 2 tiles so both v7x TensorCores get work (parallel axis).
    M = B * L
    Dp = _round_up(D, 128)
    n_row = max(2, _cdiv(M, row_tile))
    tm = min(_round_up(_cdiv(M, n_row), 16), _round_up(M, 16))
    n_tiles = _cdiv(M, tm)
    Mp = n_tiles * tm

    # Hidden-dim (H) tiling: keep whole bf16 weights VMEM-resident when they
    # fit the budget, otherwise stream (Dp, hk)/(hk, Dp) chunks and accumulate.
    Hp = _round_up(H, 128)
    fixed_vmem = (2 * tm * Dp * 2                 # x row tiles (bf16, 2 bufs)
                  + 2 * tm * Dp * out_itemsize    # output row tiles
                  + tm * Dp * 4                   # f32 accumulator scratch
                  + 2 * tm * 2 * 4                # packed BN affine tiles
                  + 2 * 2 * Dp * 4)               # b2 + colsum(W2)
    budget = int(vmem_limit * 0.85) - fixed_vmem
    resident_bytes = 2 * Dp * Hp * 2 + Hp * 4 + tm * Hp * 6  # W1+W2(1 buf)+b1+h
    if budget >= resident_bytes and (max_h_chunk is None or max_h_chunk >= Hp):
        hk = Hp
    else:
        per_h = 8 * Dp + 8 + 6 * tm               # per hidden unit, 2 bufs
        hk = max(128, (max(budget, 0) // per_h) // 128 * 128)
        if max_h_chunk is not None:
            hk = min(hk, max(128, max_h_chunk // 128 * 128))
        hk = min(hk, Hp)
    Hp = _round_up(Hp, hk)
    n_k = Hp // hk
    weights_const = (n_k == 1)

    # Stream x in bf16 (halves the dominant HBM->VMEM stream).
    x2 = x.reshape(M, D)
    if x2.dtype != jnp.bfloat16:
        x2 = x2.astype(jnp.bfloat16)
    x2 = _pad_to(x2, (Mp, Dp))

    w1p = _pad_to(w1t.astype(jnp.bfloat16), (Dp, Hp))
    w2p = _pad_to(w2t.astype(jnp.bfloat16), (Hp, Dp))
    b1p = _pad_to(b1.astype(jnp.float32).reshape(1, H), (1, Hp))
    b2p = _pad_to(b2.astype(jnp.float32).reshape(1, D), (1, Dp))
    # colsum(W2) in f32 for the hoisted BN shift term.
    w2cs = _pad_to(jnp.sum(w2t.astype(jnp.float32), axis=0).reshape(1, D),
                   (1, Dp))

    # Per-row BN affine packed into one (M, 2) f32 input: [:,0]=scale, [:,1]=shift.
    aff = jnp.concatenate(
        [jnp.tile(bn_scale.astype(jnp.float32).reshape(L, 1), (B, 1)),
         jnp.tile(bn_shift.astype(jnp.float32).reshape(L, 1), (B, 1))], axis=1)
    aff = _pad_to(aff, (Mp, 2))

    flops = 4 * Mp * Dp * Hp      # two matmuls, 2*M*K*N each
    weight_bytes = (w1p.size + w2p.size) * 2
    if n_k > 1:
        weight_bytes *= n_tiles   # weights re-streamed per row tile
    bytes_accessed = int(x2.size * 2 + Mp * Dp * out_itemsize + weight_bytes
                         + (b1p.size + b2p.size + w2cs.size) * 4
                         + aff.size * 4)

    def build(single_buffer_consts):
        def spec(shape, index_map, is_const=False):
            if single_buffer_consts and is_const:
                # Constant index_map -> fetched once; no need to double-buffer.
                return pl.BlockSpec(shape, index_map,
                                    pipeline_mode=pl.Buffered(1))
            return pl.BlockSpec(shape, index_map)

        return pl.pallas_call(
            ffn_kernel,
            out_shape=jax.ShapeDtypeStruct((Mp, Dp), out_dtype),
            grid_spec=pltpu.PrefetchScalarGridSpec(
                num_scalar_prefetch=0,
                grid=(n_tiles, n_k),
                in_specs=[
                    spec((tm, Dp), lambda i, k: (i, 0)),                 # x
                    spec((Dp, hk), lambda i, k: (0, k), weights_const),  # W1^T
                    spec((1, hk), lambda i, k: (0, k), weights_const),   # b1
                    spec((hk, Dp), lambda i, k: (k, 0), weights_const),  # W2^T
                    spec((1, Dp), lambda i, k: (0, 0), True),            # b2
                    spec((1, Dp), lambda i, k: (0, 0), True),            # colsum
                    spec((tm, 2), lambda i, k: (i, 0)),                  # BN aff
                ],
                out_specs=pl.BlockSpec((tm, Dp), lambda i, k: (i, 0)),
                scratch_shapes=[pltpu.VMEM((tm, Dp), jnp.float32)],
            ),
            compiler_params=pltpu.CompilerParams(
                dimension_semantics=("parallel", "arbitrary"),
                vmem_limit_bytes=vmem_limit),
            cost_estimate=pl.CostEstimate(
                flops=flops, transcendentals=0,
                bytes_accessed=bytes_accessed),
        )

    args = (x2, w1p, b1p, w2p, b2p, w2cs, aff)
    try:
        out = build(True)(*args)
    except Exception:
        # Fallback if this jax version rejects pipeline_mode=pl.Buffered(1).
        out = build(False)(*args)

    # Dropout is the identity at inference.
    if Mp == M and Dp == D:
        return out.reshape(B, L, D)
    return out[:M, :D].reshape(B, L, D)


def ffn_reference(x, w1t, b1, w2t, b2, bn_scale, bn_shift):
    h = jnp.maximum(x @ w1t + b1[None, None, :], 0.0)
    h = h * bn_scale[None, :, None] + bn_shift[None, :, None]
    return h @ w2t + b2[None, None, :]


if __name__ == "__main__":
    def make_inputs(key, B, L, D, H):
        k = jax.random.split(key, 8)
        x = jax.random.normal(k[0], (B, L, D), dtype=jnp.float32)
        # nn.Linear(state_size, H): weight (H, D), bias (H,)
        w1 = jax.random.normal(k[1], (H, D), dtype=jnp.float32) * 0.1
        b1 = jax.random.normal(k[2], (H,), dtype=jnp.float32) * 0.1
        # nn.Linear(H, state_size): weight (D, H), bias (D,)
        w2 = jax.random.normal(k[3], (D, H), dtype=jnp.float32) * 0.1
        b2 = jax.random.normal(k[4], (D,), dtype=jnp.float32) * 0.1
        # nn.BatchNorm1d(bn_size=L), eval mode: fold running stats into affine.
        gamma = 1.0 + 0.1 * jax.random.normal(k[5], (L,), dtype=jnp.float32)
        beta = 0.1 * jax.random.normal(k[6], (L,), dtype=jnp.float32)
        running_mean = 0.1 * jax.random.normal(k[7], (L,), dtype=jnp.float32)
        running_var = jnp.ones((L,), dtype=jnp.float32)
        eps = 1e-5
        inv_std = 1.0 / jnp.sqrt(running_var + eps)
        bn_scale = gamma * inv_std
        bn_shift = beta - running_mean * gamma * inv_std
        # Pre-transpose Linear weights for the x @ W^T convention.
        return x, w1.T, b1, w2.T, b2, bn_scale, bn_shift

    # 1) Small shapes consistent with the module (state_size=D, bn_size=L,
    #    forward_expansion=1 so H == D); resident-weight path (n_k == 1).
    B, L, D, H = 2, 8, 32, 32
    args = make_inputs(jax.random.PRNGKey(0), B, L, D, H)
    out = jax.block_until_ready(ffn_forward(*args))
    ref = ffn_reference(*args)
    assert out.shape == (B, L, D)
    # bf16 MXU operands (f32 accumulation) -> looser tolerance vs the f32 ref.
    assert jnp.allclose(out, ref, atol=3e-2, rtol=3e-2), (
        float(jnp.max(jnp.abs(out - ref))))

    # 2) Larger hidden dim with a forced 128-wide H chunk: exercises the
    #    H-tiled accumulation path and >= 2 row tiles.
    B, L, D, H = 4, 8, 32, 256
    args = make_inputs(jax.random.PRNGKey(1), B, L, D, H)
    out = jax.block_until_ready(ffn_forward(*args, max_h_chunk=128))
    ref = ffn_reference(*args)
    assert out.shape == (B, L, D)
    assert jnp.allclose(out, ref, atol=5e-2, rtol=5e-2), (
        float(jnp.max(jnp.abs(out - ref))))

    print("KERNEL_OK")
</pallas_src>

<mosaic_0001>
module attributes {stable_mosaic.version = 11 : i64} {
  func.func @ffn_kernel(%arg0: i32, %arg1: i32, %arg2: memref<16x128xbf16, #tpu.memory_space<vmem>>, %arg3: memref<128x128xbf16, #tpu.memory_space<vmem>>, %arg4: memref<1x128xf32, #tpu.memory_space<vmem>>, %arg5: memref<128x128xbf16, #tpu.memory_space<vmem>>, %arg6: memref<1x128xf32, #tpu.memory_space<vmem>>, %arg7: memref<1x128xf32, #tpu.memory_space<vmem>>, %arg8: memref<16x2xf32, #tpu.memory_space<vmem>>, %arg9: memref<16x128xf32, #tpu.memory_space<vmem>>, %arg10: memref<16x128xf32, #tpu.memory_space<vmem>>) attributes {dimension_semantics = [#tpu.dimension_semantics<parallel>, #tpu.dimension_semantics<arbitrary>], iteration_bounds = array<i64: 1, 1>, scalar_prefetch = 0 : i64, scratch_operands = 1 : i64, tpu.core_type = #tpu.core_type<tc>, window_params = [{transform_indices = @transform_0, window_bounds = array<i64: 16, 128>}, {pipeline_mode = #tpu.pipeline_mode<synchronous>, transform_indices = @transform_1, window_bounds = array<i64: 128, 128>}, {pipeline_mode = #tpu.pipeline_mode<synchronous>, transform_indices = @transform_2, window_bounds = array<i64: 1, 128>}, {pipeline_mode = #tpu.pipeline_mode<synchronous>, transform_indices = @transform_3, window_bounds = array<i64: 128, 128>}, {pipeline_mode = #tpu.pipeline_mode<synchronous>, transform_indices = @transform_4, window_bounds = array<i64: 1, 128>}, {pipeline_mode = #tpu.pipeline_mode<synchronous>, transform_indices = @transform_5, window_bounds = array<i64: 1, 128>}, {transform_indices = @transform_6, window_bounds = array<i64: 16, 2>}, {transform_indices = @transform_7, window_bounds = array<i64: 16, 128>}]} {
    %c0_i32 = arith.constant 0 : i32
    %0 = arith.cmpi eq, %arg1, %c0_i32 : i32
    %1 = arith.extui %0 : i1 to i32
    %c0_i32_0 = arith.constant 0 : i32
    %2 = arith.cmpi ne, %1, %c0_i32_0 : i32
    scf.if %2 {
      %cst_16 = arith.constant 0.000000e+00 : f32
      %20 = vector.broadcast %cst_16 : f32 to vector<16x128xf32>
      %c0_17 = arith.constant 0 : index
      %c0_18 = arith.constant 0 : index
      %21 = vector.load %arg10[%c0_17, %c0_18] : memref<16x128xf32, #tpu.memory_space<vmem>>, vector<16x128xf32>
      tpu.vector_store %arg10[%c0_17, %c0_18], %20 {strides = array<i32>} : memref<16x128xf32, #tpu.memory_space<vmem>>, vector<16x128xf32>,
    } else {
    }
    %c0 = arith.constant 0 : index
    %c0_1 = arith.constant 0 : index
    %3 = vector.load %arg2[%c0, %c0_1] : memref<16x128xbf16, #tpu.memory_space<vmem>>, vector<16x128xbf16>
    %c0_2 = arith.constant 0 : index
    %c0_3 = arith.constant 0 : index
    %4 = vector.load %arg3[%c0_2, %c0_3] : memref<128x128xbf16, #tpu.memory_space<vmem>>, vector<128x128xbf16>
    %cst = arith.constant dense<0.000000e+00> : vector<16x128xf32>
    %5 = tpu.matmul %3, %4, %cst {dimension_numbers = #tpu.dot_dimension_numbers<[1], [0], [0], [1], [0, 0, 1, 1], [], []>} : vector<16x128xbf16>, vector<128x128xbf16>, vector<16x128xf32> -> vector<16x128xf32>
    %c0_4 = arith.constant 0 : index
    %c0_5 = arith.constant 0 : index
    %6 = vector.load %arg4[%c0_4, %c0_5] : memref<1x128xf32, #tpu.memory_space<vmem>>, vector<1x128xf32>
    %7 = vector.broadcast %6 : vector<1x128xf32> to vector<16x128xf32>
    %8 = arith.addf %5, %7 : vector<16x128xf32>
    %cst_6 = arith.constant 0.000000e+00 : f32
    %9 = vector.broadcast %cst_6 : f32 to vector<16x128xf32>
    %10 = arith.maximumf %8, %9 : vector<16x128xf32>
    %c0_7 = arith.constant 0 : index
    %c0_8 = arith.constant 0 : index
    %11 = vector.load %arg10[%c0_7, %c0_8] : memref<16x128xf32, #tpu.memory_space<vmem>>, vector<16x128xf32>
    %12 = arith.truncf %10 : vector<16x128xf32> to vector<16x128xbf16>
    %c0_9 = arith.constant 0 : index
    %c0_10 = arith.constant 0 : index
    %13 = vector.load %arg5[%c0_9, %c0_10] : memref<128x128xbf16, #tpu.memory_space<vmem>>, vector<128x128xbf16>
    %cst_11 = arith.constant dense<0.000000e+00> : vector<16x128xf32>
    %14 = tpu.matmul %12, %13, %cst_11 {dimension_numbers = #tpu.dot_dimension_numbers<[1], [0], [0], [1], [0, 0, 1, 1], [], []>} : vector<16x128xbf16>, vector<128x128xbf16>, vector<16x128xf32> -> vector<16x128xf32>
    %15 = arith.addf %11, %14 : vector<16x128xf32>
    %c0_12 = arith.constant 0 : index
    %c0_13 = arith.constant 0 : index
    %16 = vector.load %arg10[%c0_12, %c0_13] : memref<16x128xf32, #tpu.memory_space<vmem>>, vector<16x128xf32>
    tpu.vector_store %arg10[%c0_12, %c0_13], %15 {strides = array<i32>} : memref<16x128xf32, #tpu.memory_space<vmem>>, vector<16x128xf32>,
    %c0_i32_14 = arith.constant 0 : i32
    %17 = arith.cmpi eq, %arg1, %c0_i32_14 : i32
    %18 = arith.extui %17 : i1 to i32
    %c0_i32_15 = arith.constant 0 : i32
    %19 = arith.cmpi ne, %18, %c0_i32_15 : i32
    scf.if %19 {
      %c0_16 = arith.constant 0 : index
      %c0_17 = arith.constant 0 : index
      %20 = vector.load %arg8[%c0_16, %c0_17] : memref<16x2xf32, #tpu.memory_space<vmem>>, vector<16x1xf32>
      %c0_18 = arith.constant 0 : index
      %c1 = arith.constant 1 : index
      %21 = vector.load %arg8[%c0_18, %c1] : memref<16x2xf32, #tpu.memory_space<vmem>>, vector<16x1xf32>
      %c0_19 = arith.constant 0 : index
      %c0_20 = arith.constant 0 : index
      %22 = vector.load %arg10[%c0_19, %c0_20] : memref<16x128xf32, #tpu.memory_space<vmem>>, vector<16x128xf32>
      %23 = vector.broadcast %20 : vector<16x1xf32> to vector<16x128xf32>
      %24 = arith.mulf %23, %22 : vector<16x128xf32>
      %c0_21 = arith.constant 0 : index
      %c0_22 = arith.constant 0 : index
      %25 = vector.load %arg7[%c0_21, %c0_22] : memref<1x128xf32, #tpu.memory_space<vmem>>, vector<1x128xf32>
      %26 = vector.broadcast %21 : vector<16x1xf32> to vector<16x128xf32>
      %27 = vector.broadcast %25 : vector<1x128xf32> to vector<16x128xf32>
      %28 = arith.mulf %26, %27 : vector<16x128xf32>
      %29 = arith.addf %24, %28 : vector<16x128xf32>
      %c0_23 = arith.constant 0 : index
      %c0_24 = arith.constant 0 : index
      %30 = vector.load %arg6[%c0_23, %c0_24] : memref<1x128xf32, #tpu.memory_space<vmem>>, vector<1x128xf32>
      %31 = vector.broadcast %30 : vector<1x128xf32> to vector<16x128xf32>
      %32 = arith.addf %29, %31 : vector<16x128xf32>
      %c0_25 = arith.constant 0 : index
      %c0_26 = arith.constant 0 : index
      %33 = vector.load %arg9[%c0_25, %c0_26] : memref<16x128xf32, #tpu.memory_space<vmem>>, vector<16x128xf32>
      tpu.vector_store %arg9[%c0_25, %c0_26], %32 {strides = array<i32>} : memref<16x128xf32, #tpu.memory_space<vmem>>, vector<16x128xf32>,
    } else {
    }
    return
  }
  func.func @transform_0(%arg0: i32, %arg1: i32) -> (i32, i32) {
    %c0_i32 = arith.constant 0 : i32
    %c0_i32_0 = arith.constant 0 : i32
    return %arg0, %c0_i32 : i32, i32
  }
  func.func @transform_1(%arg0: i32, %arg1: i32) -> (i32, i32) {
    %c0_i32 = arith.constant 0 : i32
    %c0_i32_0 = arith.constant 0 : i32
    return %c0_i32, %arg1 : i32, i32
  }
  func.func @transform_2(%arg0: i32, %arg1: i32) -> (i32, i32) {
    %c0_i32 = arith.constant 0 : i32
    %c0_i32_0 = arith.constant 0 : i32
    return %c0_i32, %arg1 : i32, i32
  }
  func.func @transform_3(%arg0: i32, %arg1: i32) -> (i32, i32) {
    %c0_i32 = arith.constant 0 : i32
    %c0_i32_0 = arith.constant 0 : i32
    return %arg1, %c0_i32 : i32, i32
  }
  func.func @transform_4(%arg0: i32, %arg1: i32) -> (i32, i32) {
    %c0_i32 = arith.constant 0 : i32
    %c0_i32_0 = arith.constant 0 : i32
    %c0_i32_1 = arith.constant 0 : i32
    return %c0_i32, %c0_i32_0 : i32, i32
  }
  func.func @transform_5(%arg0: i32, %arg1: i32) -> (i32, i32) {
    %c0_i32 = arith.constant 0 : i32
    %c0_i32_0 = arith.constant 0 : i32
    %c0_i32_1 = arith.constant 0 : i32
    return %c0_i32, %c0_i32_0 : i32, i32
  }
  func.func @transform_6(%arg0: i32, %arg1: i32) -> (i32, i32) {
    %c0_i32 = arith.constant 0 : i32
    %c0_i32_0 = arith.constant 0 : i32
    return %arg0, %c0_i32 : i32, i32
  }
  func.func @transform_7(%arg0: i32, %arg1: i32) -> (i32, i32) {
    %c0_i32 = arith.constant 0 : i32
    %c0_i32_0 = arith.constant 0 : i32
    return %arg0, %c0_i32 : i32, i32
  }
}

module attributes {stable_mosaic.version = 11 : i64} {
  func.func @ffn_kernel(%arg0: i32, %arg1: i32, %arg2: memref<16x128xbf16, #tpu.memory_space<vmem>>, %arg3: memref<128x128xbf16, #tpu.memory_space<vmem>>, %arg4: memref<1x128xf32, #tpu.memory_space<vmem>>, %arg5: memref<128x128xbf16, #tpu.memory_space<vmem>>, %arg6: memref<1x128xf32, #tpu.memory_space<vmem>>, %arg7: memref<1x128xf32, #tpu.memory_space<vmem>>, %arg8: memref<16x2xf32, #tpu.memory_space<vmem>>, %arg9: memref<16x128xf32, #tpu.memory_space<vmem>>, %arg10: memref<16x128xf32, #tpu.memory_space<vmem>>) attributes {dimension_semantics = [#tpu.dimension_semantics<parallel>, #tpu.dimension_semantics<arbitrary>], iteration_bounds = array<i64: 1, 1>, scalar_prefetch = 0 : i64, scratch_operands = 1 : i64, tpu.core_type = #tpu.core_type<tc>, window_params = [{transform_indices = @transform_0, window_bounds = array<i64: 16, 128>}, {transform_indices = @transform_1, window_bounds = array<i64: 128, 128>}, {transform_indices = @transform_2, window_bounds = array<i64: 1, 128>}, {transform_indices = @transform_3, window_bounds = array<i64: 128, 128>}, {pipeline_mode = #tpu.pipeline_mode<synchronous>, transform_indices = @transform_4, window_bounds = array<i64: 1, 128>}, {pipeline_mode = #tpu.pipeline_mode<synchronous>, transform_indices = @transform_5, window_bounds = array<i64: 1, 128>}, {transform_indices = @transform_6, window_bounds = array<i64: 16, 2>}, {transform_indices = @transform_7, window_bounds = array<i64: 16, 128>}]} {
    %c0_i32 = arith.constant 0 : i32
    %0 = arith.cmpi eq, %arg1, %c0_i32 : i32
    %1 = arith.extui %0 : i1 to i32
    %c0_i32_0 = arith.constant 0 : i32
    %2 = arith.cmpi ne, %1, %c0_i32_0 : i32
    scf.if %2 {
      %cst_16 = arith.constant 0.000000e+00 : f32
      %20 = vector.broadcast %cst_16 : f32 to vector<16x128xf32>
      %c0_17 = arith.constant 0 : index
      %c0_18 = arith.constant 0 : index
      %21 = vector.load %arg10[%c0_17, %c0_18] : memref<16x128xf32, #tpu.memory_space<vmem>>, vector<16x128xf32>
      tpu.vector_store %arg10[%c0_17, %c0_18], %20 {strides = array<i32>} : memref<16x128xf32, #tpu.memory_space<vmem>>, vector<16x128xf32>,
    } else {
    }
    %c0 = arith.constant 0 : index
    %c0_1 = arith.constant 0 : index
    %3 = vector.load %arg2[%c0, %c0_1] : memref<16x128xbf16, #tpu.memory_space<vmem>>, vector<16x128xbf16>
    %c0_2 = arith.constant 0 : index
    %c0_3 = arith.constant 0 : index
    %4 = vector.load %arg3[%c0_2, %c0_3] : memref<128x128xbf16, #tpu.memory_space<vmem>>, vector<128x128xbf16>
    %cst = arith.constant dense<0.000000e+00> : vector<16x128xf32>
    %5 = tpu.matmul %3, %4, %cst {dimension_numbers = #tpu.dot_dimension_numbers<[1], [0], [0], [1], [0, 0, 1, 1], [], []>} : vector<16x128xbf16>, vector<128x128xbf16>, vector<16x128xf32> -> vector<16x128xf32>
    %c0_4 = arith.constant 0 : index
    %c0_5 = arith.constant 0 : index
    %6 = vector.load %arg4[%c0_4, %c0_5] : memref<1x128xf32, #tpu.memory_space<vmem>>, vector<1x128xf32>
    %7 = vector.broadcast %6 : vector<1x128xf32> to vector<16x128xf32>
    %8 = arith.addf %5, %7 : vector<16x128xf32>
    %cst_6 = arith.constant 0.000000e+00 : f32
    %9 = vector.broadcast %cst_6 : f32 to vector<16x128xf32>
    %10 = arith.maximumf %8, %9 : vector<16x128xf32>
    %c0_7 = arith.constant 0 : index
    %c0_8 = arith.constant 0 : index
    %11 = vector.load %arg10[%c0_7, %c0_8] : memref<16x128xf32, #tpu.memory_space<vmem>>, vector<16x128xf32>
    %12 = arith.truncf %10 : vector<16x128xf32> to vector<16x128xbf16>
    %c0_9 = arith.constant 0 : index
    %c0_10 = arith.constant 0 : index
    %13 = vector.load %arg5[%c0_9, %c0_10] : memref<128x128xbf16, #tpu.memory_space<vmem>>, vector<128x128xbf16>
    %cst_11 = arith.constant dense<0.000000e+00> : vector<16x128xf32>
    %14 = tpu.matmul %12, %13, %cst_11 {dimension_numbers = #tpu.dot_dimension_numbers<[1], [0], [0], [1], [0, 0, 1, 1], [], []>} : vector<16x128xbf16>, vector<128x128xbf16>, vector<16x128xf32> -> vector<16x128xf32>
    %15 = arith.addf %11, %14 : vector<16x128xf32>
    %c0_12 = arith.constant 0 : index
    %c0_13 = arith.constant 0 : index
    %16 = vector.load %arg10[%c0_12, %c0_13] : memref<16x128xf32, #tpu.memory_space<vmem>>, vector<16x128xf32>
    tpu.vector_store %arg10[%c0_12, %c0_13], %15 {strides = array<i32>} : memref<16x128xf32, #tpu.memory_space<vmem>>, vector<16x128xf32>,
    %c0_i32_14 = arith.constant 0 : i32
    %17 = arith.cmpi eq, %arg1, %c0_i32_14 : i32
    %18 = arith.extui %17 : i1 to i32
    %c0_i32_15 = arith.constant 0 : i32
    %19 = arith.cmpi ne, %18, %c0_i32_15 : i32
    scf.if %19 {
      %c0_16 = arith.constant 0 : index
      %c0_17 = arith.constant 0 : index
      %20 = vector.load %arg8[%c0_16, %c0_17] : memref<16x2xf32, #tpu.memory_space<vmem>>, vector<16x1xf32>
      %c0_18 = arith.constant 0 : index
      %c1 = arith.constant 1 : index
      %21 = vector.load %arg8[%c0_18, %c1] : memref<16x2xf32, #tpu.memory_space<vmem>>, vector<16x1xf32>
      %c0_19 = arith.constant 0 : index
      %c0_20 = arith.constant 0 : index
      %22 = vector.load %arg10[%c0_19, %c0_20] : memref<16x128xf32, #tpu.memory_space<vmem>>, vector<16x128xf32>
      %23 = vector.broadcast %20 : vector<16x1xf32> to vector<16x128xf32>
      %24 = arith.mulf %23, %22 : vector<16x128xf32>
      %c0_21 = arith.constant 0 : index
      %c0_22 = arith.constant 0 : index
      %25 = vector.load %arg7[%c0_21, %c0_22] : memref<1x128xf32, #tpu.memory_space<vmem>>, vector<1x128xf32>
      %26 = vector.broadcast %21 : vector<16x1xf32> to vector<16x128xf32>
      %27 = vector.broadcast %25 : vector<1x128xf32> to vector<16x128xf32>
      %28 = arith.mulf %26, %27 : vector<16x128xf32>
      %29 = arith.addf %24, %28 : vector<16x128xf32>
      %c0_23 = arith.constant 0 : index
      %c0_24 = arith.constant 0 : index
      %30 = vector.load %arg6[%c0_23, %c0_24] : memref<1x128xf32, #tpu.memory_space<vmem>>, vector<1x128xf32>
      %31 = vector.broadcast %30 : vector<1x128xf32> to vector<16x128xf32>
      %32 = arith.addf %29, %31 : vector<16x128xf32>
      %c0_25 = arith.constant 0 : index
      %c0_26 = arith.constant 0 : index
      %33 = vector.load %arg9[%c0_25, %c0_26] : memref<16x128xf32, #tpu.memory_space<vmem>>, vector<16x128xf32>
      tpu.vector_store %arg9[%c0_25, %c0_26], %32 {strides = array<i32>} : memref<16x128xf32, #tpu.memory_space<vmem>>, vector<16x128xf32>,
    } else {
    }
    return
  }
  func.func @transform_0(%arg0: i32, %arg1: i32) -> (i32, i32) {
    %c0_i32 = arith.constant 0 : i32
    %c0_i32_0 = arith.constant 0 : i32
    return %arg0, %c0_i32 : i32, i32
  }
  func.func @transform_1(%arg0: i32, %arg1: i32) -> (i32, i32) {
    %c0_i32 = arith.constant 0 : i32
    %c0_i32_0 = arith.constant 0 : i32
    return %c0_i32, %arg1 : i32, i32
  }
  func.func @transform_2(%arg0: i32, %arg1: i32) -> (i32, i32) {
    %c0_i32 = arith.constant 0 : i32
    %c0_i32_0 = arith.constant 0 : i32
    return %c0_i32, %arg1 : i32, i32
  }
  func.func @transform_3(%arg0: i32, %arg1: i32) -> (i32, i32) {
    %c0_i32 = arith.constant 0 : i32
    %c0_i32_0 = arith.constant 0 : i32
    return %arg1, %c0_i32 : i32, i32
  }
  func.func @transform_4(%arg0: i32, %arg1: i32) -> (i32, i32) {
    %c0_i32 = arith.constant 0 : i32
    %c0_i32_0 = arith.constant 0 : i32
    %c0_i32_1 = arith.constant 0 : i32
    return %c0_i32, %c0_i32_0 : i32, i32
  }
  func.func @transform_5(%arg0: i32, %arg1: i32) -> (i32, i32) {
    %c0_i32 = arith.constant 0 : i32
    %c0_i32_0 = arith.constant 0 : i32
    %c0_i32_1 = arith.constant 0 : i32
    return %c0_i32, %c0_i32_0 : i32, i32
  }
  func.func @transform_6(%arg0: i32, %arg1: i32) -> (i32, i32) {
    %c0_i32 = arith.constant 0 : i32
    %c0_i32_0 = arith.constant 0 : i32
    return %arg0, %c0_i32 : i32, i32
  }
  func.func @transform_7(%arg0: i32, %arg1: i32) -> (i32, i32) {
    %c0_i32 = arith.constant 0 : i32
    %c0_i32_0 = arith.constant 0 : i32
    return %arg0, %c0_i32 : i32, i32
  }
}

</mosaic_0001>

<llo_original>
// kernel: tpu_custom_call.1
$region0: #{tpu_custom_call.1}
  #allocation0 [shape = 'u32[]', space=smem, size = 0x4, offset = 0x4, fixed_abs, tag = 'smem constant byte address 0x4 - core index']
  #allocation1 [shape = 'u32[72,128]{1,0:T(1,128)}', space=vmem, size = 0x9000, scoped, tag = 'internal scratch']
  #allocation2 [shape = 'f32[16,128]{1,0:T(8,128)}', space=vmem, size = 0x2000, scoped, tag = 'scratch operand']
  %s0 = inlined_call_operand.vmem [shape: bf16[16,128], index: 0, kind: input, shape index: {}]
  %s1 = inlined_call_operand.hbm [shape: bf16[128,128], index: 1, kind: input, shape index: {}]
  %s2 = inlined_call_operand.vmem [shape: f32[1,128], index: 2, kind: input, shape index: {}]
  %s3 = inlined_call_operand.hbm [shape: bf16[128,128], index: 3, kind: input, shape index: {}]
  %s4 = inlined_call_operand.vmem [shape: f32[1,128], index: 4, kind: input, shape index: {}]
  %s5 = inlined_call_operand.vmem [shape: f32[1,128], index: 5, kind: input, shape index: {}]
  %s6 = inlined_call_operand.vmem [shape: f32[16,2], index: 6, kind: input, shape index: {}]
  %s7 = inlined_call_operand.hbm [shape: f32[16,128], index: 7, kind: output, shape index: {}]
  %s8 = sld [smem:[#allocation0]]
  $region54: #{tpu_custom_call.1} parent=0
    _
  %s10 = ssub.s32 1, %s8
  %s11 = scalar_select 0, %s10, %s8
  $region1: #{tpu_custom_call.1} parent=0
    #allocation3 [shape = 'u8[32768]{0}', space=vmem, size = 0x8000, scoped, tag = 'input window, operand 1, single buffered']
    #allocation4 [shape = 's32[1]{0}', space=sflag, size = 0x4, scoped, tag = 'scoped memory for tpu_custom_call.1']
    #allocation5 [shape = 's32[1]{0}', space=sflag, size = 0x4, scoped, tag = 'scoped memory for tpu_custom_call.1']
    #allocation6 [shape = 'u8[32768]{0}', space=vmem, size = 0x8000, scoped, tag = 'input window, operand 3, single buffered']
    #allocation7 [shape = 's32[1]{0}', space=sflag, size = 0x4, scoped, tag = 'scoped memory for tpu_custom_call.1']
    #allocation8 [shape = 'u8[8192]{0}', space=vmem, size = 0x2000, scoped, tag = 'output window, operand 0, single buffered']
    %12 = vsyncpa [#allocation4], 0
    %13 = vsyncpa [#allocation7], 0
    %14 = vsyncpa [#allocation5], 0
    // Predicated region
    $region2: #{tpu_custom_call.1} parent=1 // pred_check
      _
    $region3: #{tpu_custom_call.1} parent=1 // pred_check_branch
      %16 = sbr.rel (0) target = $region5
    $region4: #{tpu_custom_call.1} parent=1 // pred_region
      _
    $region5: #{tpu_custom_call.1} parent=1 // pred_fallthru
      _
    // Predicated region
    $region6: #{tpu_custom_call.1} parent=1 // pred_check
      _
    $region7: #{tpu_custom_call.1} parent=1 // pred_check_branch
      %18 = sbr.rel (0) target = $region9
    $region8: #{tpu_custom_call.1} parent=1 // pred_region
      %20 = vsyncadd [#allocation4], 0
      %s21 = sshll.u32 %s1, 4
      %s22 = int_to_ptr.hbm [resolvable:$true] %s21
      %s23 = sshll.u32 [#allocation3], 4
      %s24 = int_to_ptr.vmem [resolvable:$true] %s23
      %29 = dma.hbm_to_vmem [thread:$0]  %s22, 1024, %s24, [#allocation4], 64, 64, 4
    $region9: #{tpu_custom_call.1} parent=1 // pred_fallthru
      _
    // Predicated region
    $region10: #{tpu_custom_call.1} parent=1 // pred_check
      _
    $region11: #{tpu_custom_call.1} parent=1 // pred_check_branch
      %31 = sbr.rel (0) target = $region13
    $region12: #{tpu_custom_call.1} parent=1 // pred_region
      _
    $region13: #{tpu_custom_call.1} parent=1 // pred_fallthru
      _
    // Predicated region
    $region14: #{tpu_custom_call.1} parent=1 // pred_check
      _
    $region15: #{tpu_custom_call.1} parent=1 // pred_check_branch
      %33 = sbr.rel (0) target = $region17
    $region16: #{tpu_custom_call.1} parent=1 // pred_region
      %35 = vsyncadd [#allocation7], 0
      %s36 = sshll.u32 %s3, 4
      %s37 = int_to_ptr.hbm [resolvable:$true] %s36
      %s38 = sshll.u32 [#allocation6], 4
      %s39 = int_to_ptr.vmem [resolvable:$true] %s38
      %44 = dma.hbm_to_vmem [thread:$0]  %s37, 1024, %s39, [#allocation7], 64, 64, 4
    $region17: #{tpu_custom_call.1} parent=1 // pred_fallthru
      _
    // Predicated region
    $region18: #{tpu_custom_call.1} parent=1 // pred_check
      _
    $region19: #{tpu_custom_call.1} parent=1 // pred_check_branch
      %46 = sbr.rel (0) target = $region21
    $region20: #{tpu_custom_call.1} parent=1 // pred_region
      _
    $region21: #{tpu_custom_call.1} parent=1 // pred_fallthru
      _
    // Predicated region
    $region22: #{tpu_custom_call.1} parent=1 // pred_check
      _
    $region23: #{tpu_custom_call.1} parent=1 // pred_check_branch
      %48 = sbr.rel (0) target = $region25
    $region24: #{tpu_custom_call.1} parent=1 // pred_region
      _
    $region25: #{tpu_custom_call.1} parent=1 // pred_fallthru
      _
    // Predicated region
    $region26: #{tpu_custom_call.1} parent=1 // pred_check
      _
    $region27: #{tpu_custom_call.1} parent=1 // pred_check_branch
      %50 = sbr.rel (0) target = $region29
    $region28: #{tpu_custom_call.1} parent=1 // pred_region
      _
    $region29: #{tpu_custom_call.1} parent=1 // pred_fallthru
      _
    // Predicated region
    $region30: #{tpu_custom_call.1} parent=1 // pred_check
      _
    $region31: #{tpu_custom_call.1} parent=1 // pred_check_branch
      %52 = sbr.rel (0) target = $region33
    $region32: #{tpu_custom_call.1} parent=1 // pred_region
      %54 = dma.done [#allocation4], 1024
    $region33: #{tpu_custom_call.1} parent=1 // pred_fallthru
      _
    // Predicated region
    $region34: #{tpu_custom_call.1} parent=1 // pred_check
      _
    $region35: #{tpu_custom_call.1} parent=1 // pred_check_branch
      %56 = sbr.rel (0) target = $region37
    $region36: #{tpu_custom_call.1} parent=1 // pred_region
      %58 = dma.done [#allocation7], 1024
    $region37: #{tpu_custom_call.1} parent=1 // pred_fallthru
      _
    %p59 = scmp.eq.s32.totalorder 0, 0
    // Predicated region
    $region38: #{tpu_custom_call.1} parent=1 // pred_check
      %p60 = pneg %p59
    $region39: #{tpu_custom_call.1} parent=1 // pred_check_branch
      %62 = sbr.rel (%p60) target = $region41
    $region40: #{tpu_custom_call.1} parent=1 // pred_region
      %63 = vst [vmem:[#allocation2] sm:$0xff] 0.0
      %64 = vst [vmem:[#allocation2 + $0x8] sm:$0xff] 0.0
    $region41: #{tpu_custom_call.1} parent=1 // pred_fallthru
      _
    %v65 = vld [vmem:[%s0] sm:$0xf]
    %v66 = vld [vmem:[%s0 + $0x4] sm:$0xf]
    %v67 = vld [vmem:[#allocation3] sm:$0xf]
    %v68 = vld [vmem:[#allocation3 + $0x4] sm:$0xf]
    %v69 = vld [vmem:[#allocation3 + $0x8] sm:$0xf]
    %v70 = vld [vmem:[#allocation3 + $0xc] sm:$0xf]
    %v71 = vld [vmem:[#allocation3 + $0x10] sm:$0xf]
    %v72 = vld [vmem:[#allocation3 + $0x14] sm:$0xf]
    %v73 = vld [vmem:[#allocation3 + $0x18] sm:$0xf]
    %v74 = vld [vmem:[#allocation3 + $0x1c] sm:$0xf]
    %v75 = vld [vmem:[#allocation3 + $0x20] sm:$0xf]
    %v76 = vld [vmem:[#allocation3 + $0x24] sm:$0xf]
    %v77 = vld [vmem:[#allocation3 + $0x28] sm:$0xf]
    %v78 = vld [vmem:[#allocation3 + $0x2c] sm:$0xf]
    %v79 = vld [vmem:[#allocation3 + $0x30] sm:$0xf]
    %v80 = vld [vmem:[#allocation3 + $0x34] sm:$0xf]
    %v81 = vld [vmem:[#allocation3 + $0x38] sm:$0xf]
    %v82 = vld [vmem:[#allocation3 + $0x3c] sm:$0xf]
    %v83 = vld [vmem:[%s2] sm:$0x1]
    %v85 = vperm.slane %v83, 0
    %v89 = vunpack.c.l.b16 %v65
    %v90 = vunpack.c.l.b16 %v66
    %v91 = vpack.c.b16 %v90, %v89
    %v109 = vunpack.c.l.b16 %v67
    %v110 = vunpack.c.l.b16 %v68
    %v111 = vunpack.c.l.b16 %v69
    %v112 = vunpack.c.l.b16 %v70
    %v113 = vunpack.c.l.b16 %v71
    %v114 = vunpack.c.l.b16 %v72
    %v115 = vunpack.c.l.b16 %v73
    %v116 = vunpack.c.l.b16 %v74
    %v117 = vunpack.c.l.b16 %v75
    %v118 = vunpack.c.l.b16 %v76
    %v119 = vunpack.c.l.b16 %v77
    %v120 = vunpack.c.l.b16 %v78
    %v121 = vunpack.c.l.b16 %v79
    %v122 = vunpack.c.l.b16 %v80
    %v123 = vunpack.c.l.b16 %v81
    %v124 = vunpack.c.l.b16 %v82
    %v125 = vpack.c.b16 %v110, %v109
    %v126 = vpack.c.b16 %v112, %v111
    %v127 = vpack.c.b16 %v114, %v113
    %v128 = vpack.c.b16 %v116, %v115
    %v129 = vpack.c.b16 %v118, %v117
    %v130 = vpack.c.b16 %v120, %v119
    %v131 = vpack.c.b16 %v122, %v121
    %v132 = vpack.c.b16 %v124, %v123
    %141 = vmatpush.bf16.msra.mxu0 %v132
    %142 = vmatpush.bf16.msra.mxu0 %v131
    %143 = vmatpush.bf16.msra.mxu0 %v130
    %144 = vmatpush.bf16.msra.mxu0 %v129
    %145 = vmatpush.bf16.msra.mxu0 %v128
    %146 = vmatpush.bf16.msra.mxu0 %v127
    %147 = vmatpush.bf16.msra.mxu0 %v126
    %148 = vmatpush.bf16.msra.mxu0 %v125
    %149 = vmatmul.bf16.gmra.mxu0 %v91
    %v150 = vpop.f32.mrf.mxu0
    %v151 = vadd.f32 %v85, %v150
    %v152 = vpop.f32.mrf.mxu0
    %v153 = vadd.f32 %v85, %v152
    %154 = vdwg.mxu0
    %v155 = vmax.f32 %v151, 0.0
    %v156 = vmax.f32 %v153, 0.0
    %v157 = vld [vmem:[#allocation2] sm:$0xff]
    %v158 = vld [vmem:[#allocation2 + $0x8] sm:$0xff]
    %v159 = vpack.c.bf16 %v156, %v155
    %v160 = vld [vmem:[#allocation6] sm:$0xf]
    %v161 = vld [vmem:[#allocation6 + $0x4] sm:$0xf]
    %v162 = vld [vmem:[#allocation6 + $0x8] sm:$0xf]
    %v163 = vld [vmem:[#allocation6 + $0xc] sm:$0xf]
    %v164 = vld [vmem:[#allocation6 + $0x10] sm:$0xf]
    %v165 = vld [vmem:[#allocation6 + $0x14] sm:$0xf]
    %v166 = vld [vmem:[#allocation6 + $0x18] sm:$0xf]
    %v167 = vld [vmem:[#allocation6 + $0x1c] sm:$0xf]
    %v168 = vld [vmem:[#allocation6 + $0x20] sm:$0xf]
    %v169 = vld [vmem:[#allocation6 + $0x24] sm:$0xf]
    %v170 = vld [vmem:[#allocation6 + $0x28] sm:$0xf]
    %v171 = vld [vmem:[#allocation6 + $0x2c] sm:$0xf]
    %v172 = vld [vmem:[#allocation6 + $0x30] sm:$0xf]
    %v173 = vld [vmem:[#allocation6 + $0x34] sm:$0xf]
    %v174 = vld [vmem:[#allocation6 + $0x38] sm:$0xf]
    %v175 = vld [vmem:[#allocation6 + $0x3c] sm:$0xf]
    %v192 = vunpack.c.l.b16 %v160
    %v193 = vunpack.c.l.b16 %v161
    %v194 = vunpack.c.l.b16 %v162
    %v195 = vunpack.c.l.b16 %v163
    %v196 = vunpack.c.l.b16 %v164
    %v197 = vunpack.c.l.b16 %v165
    %v198 = vunpack.c.l.b16 %v166
    %v199 = vunpack.c.l.b16 %v167
    %v200 = vunpack.c.l.b16 %v168
    %v201 = vunpack.c.l.b16 %v169
    %v202 = vunpack.c.l.b16 %v170
    %v203 = vunpack.c.l.b16 %v171
    %v204 = vunpack.c.l.b16 %v172
    %v205 = vunpack.c.l.b16 %v173
    %v206 = vunpack.c.l.b16 %v174
    %v207 = vunpack.c.l.b16 %v175
    %v208 = vpack.c.b16 %v193, %v192
    %v209 = vpack.c.b16 %v195, %v194
    %v210 = vpack.c.b16 %v197, %v196
    %v211 = vpack.c.b16 %v199, %v198
    %v212 = vpack.c.b16 %v201, %v200
    %v213 = vpack.c.b16 %v203, %v202
    %v214 = vpack.c.b16 %v205, %v204
    %v215 = vpack.c.b16 %v207, %v206
    %224 = vmatpush.bf16.msra.mxu0 %v215
    %225 = vmatpush.bf16.msra.mxu0 %v214
    %226 = vmatpush.bf16.msra.mxu0 %v213
    %227 = vmatpush.bf16.msra.mxu0 %v212
    %228 = vmatpush.bf16.msra.mxu0 %v211
    %229 = vmatpush.bf16.msra.mxu0 %v210
    %230 = vmatpush.bf16.msra.mxu0 %v209
    %231 = vmatpush.bf16.msra.mxu0 %v208
    %232 = vmatmul.bf16.gmra.mxu0 %v159
    %v233 = vpop.f32.mrf.mxu0
    %v234 = vadd.f32 0.0, %v233
    %v235 = vpop.f32.mrf.mxu0
    %v236 = vadd.f32 0.0, %v235
    %237 = vdwg.mxu0
    %v238 = vadd.f32 %v157, %v234
    %v239 = vadd.f32 %v158, %v236
    %240 = vst [vmem:[#allocation2] sm:$0xff] %v238
    %241 = vst [vmem:[#allocation2 + $0x8] sm:$0xff] %v239
    // Predicated region
    $region42: #{tpu_custom_call.1} parent=1 // pred_check
      %p242 = pneg %p59
    $region43: #{tpu_custom_call.1} parent=1 // pred_check_branch
      %244 = sbr.rel (%p242) target = $region45
    $region44: #{tpu_custom_call.1} parent=1 // pred_region
      %v245 = vld [vmem:[%s6] sm:$0xff]
      %v246 = vld [vmem:[%s6 + $0x8] sm:$0xff]
      %v247 = vld [vmem:[#allocation2] sm:$0xff]
      %v248 = vld [vmem:[#allocation2 + $0x8] sm:$0xff]
      %250 = vset.pattern.permute.xlu0 0
      %251 = vperm.xlu0 %250, %v245
      %v252 = vpop.permute.xlu0 %251
      %255 = vset.pattern.permute.xlu0 0
      %256 = vperm.xlu0 %255, %v246
      %v257 = vpop.permute.xlu0 %256
      %v259 = vmul.f32 %v252, %v247
      %v260 = vmul.f32 %v257, %v248
      %v261 = vld [vmem:[%s5] sm:$0x1]
      %262 = vset.pattern.permute.xlu0 1
      %263 = vperm.xlu0 %262, %v245
      %v264 = vpop.permute.xlu0 %263
      %266 = vset.pattern.permute.xlu0 1
      %267 = vperm.xlu0 %266, %v246
      %v268 = vpop.permute.xlu0 %267
      %v271 = vperm.slane %v261, 0
      %v273 = vmul.f32 %v264, %v271
      %v274 = vmul.f32 %v268, %v271
      %v275 = vadd.f32 %v259, %v273
      %v276 = vadd.f32 %v260, %v274
      %v277 = vld [vmem:[%s4] sm:$0x1]
      %v279 = vperm.slane %v277, 0
      %v281 = vadd.f32 %v275, %v279
      %v282 = vadd.f32 %v276, %v279
      %283 = vst [vmem:[#allocation8] sm:$0xff] %v281
      %284 = vst [vmem:[#allocation8 + $0x8] sm:$0xff] %v282
    $region45: #{tpu_custom_call.1} parent=1 // pred_fallthru
      _
    // Predicated region
    $region46: #{tpu_custom_call.1} parent=1 // pred_check
      _
    $region47: #{tpu_custom_call.1} parent=1 // pred_check_branch
      %286 = sbr.rel (0) target = $region49
    $region48: #{tpu_custom_call.1} parent=1 // pred_region
      %288 = vsyncadd [#allocation5], 0
      %s289 = sshll.u32 [#allocation8], 4
      %s290 = int_to_ptr.vmem [resolvable:$true] %s289
      %s291 = sshll.u32 %s7, 4
      %s292 = int_to_ptr.hbm [resolvable:$true] %s291
      %297 = dma.vmem_to_hbm [thread:$0]  %s290, 256, %s292, [#allocation5], 128, 128, 8
    $region49: #{tpu_custom_call.1} parent=1 // pred_fallthru
      _
    // Predicated region
    $region50: #{tpu_custom_call.1} parent=1 // pred_check
      _
    $region51: #{tpu_custom_call.1} parent=1 // pred_check_branch
      %299 = sbr.rel (0) target = $region53
    $region52: #{tpu_custom_call.1} parent=1 // pred_region
      %301 = dma.done [#allocation5], 256
    $region53: #{tpu_custom_call.1} parent=1 // pred_fallthru
      _
    %302 = vsyncpa [#allocation4], 1
    %303 = vsyncpa [#allocation7], 1
    %304 = vsyncpa [#allocation5], 1

// kernel: tpu_custom_call.1
$region0: #{tpu_custom_call.1}
  #allocation0 [shape = 'u32[]', space=smem, size = 0x4, offset = 0x4, fixed_abs, tag = 'smem constant byte address 0x4 - core index']
  #allocation1 [shape = 'u32[72,128]{1,0:T(1,128)}', space=vmem, size = 0x9000, scoped, tag = 'internal scratch']
  #allocation2 [shape = 'f32[16,128]{1,0:T(8,128)}', space=vmem, size = 0x2000, scoped, tag = 'scratch operand']
  %s0 = inlined_call_operand.vmem [shape: bf16[16,128], index: 0, kind: input, shape index: {}]
  %s1 = inlined_call_operand.hbm [shape: bf16[128,128], index: 1, kind: input, shape index: {}]
  %s2 = inlined_call_operand.vmem [shape: f32[1,128], index: 2, kind: input, shape index: {}]
  %s3 = inlined_call_operand.hbm [shape: bf16[128,128], index: 3, kind: input, shape index: {}]
  %s4 = inlined_call_operand.vmem [shape: f32[1,128], index: 4, kind: input, shape index: {}]
  %s5 = inlined_call_operand.vmem [shape: f32[1,128], index: 5, kind: input, shape index: {}]
  %s6 = inlined_call_operand.vmem [shape: f32[16,2], index: 6, kind: input, shape index: {}]
  %s7 = inlined_call_operand.hbm [shape: f32[16,128], index: 7, kind: output, shape index: {}]
  %s8 = sld [smem:[#allocation0]]
  $region54: #{tpu_custom_call.1} parent=0
    _
  %s10 = ssub.s32 1, %s8
  %s11 = scalar_select 0, %s10, %s8
  $region1: #{tpu_custom_call.1} parent=0
    #allocation3 [shape = 'u8[32768]{0}', space=vmem, size = 0x8000, scoped, tag = 'input window, operand 1, single buffered']
    #allocation4 [shape = 's32[1]{0}', space=sflag, size = 0x4, scoped, tag = 'scoped memory for tpu_custom_call.1']
    #allocation5 [shape = 's32[1]{0}', space=sflag, size = 0x4, scoped, tag = 'scoped memory for tpu_custom_call.1']
    #allocation6 [shape = 'u8[32768]{0}', space=vmem, size = 0x8000, scoped, tag = 'input window, operand 3, single buffered']
    #allocation7 [shape = 's32[1]{0}', space=sflag, size = 0x4, scoped, tag = 'scoped memory for tpu_custom_call.1']
    #allocation8 [shape = 'u8[8192]{0}', space=vmem, size = 0x2000, scoped, tag = 'output window, operand 0, single buffered']
    %12 = vsyncpa [#allocation4], 0
    %13 = vsyncpa [#allocation7], 0
    %14 = vsyncpa [#allocation5], 0
    // Predicated region
    $region2: #{tpu_custom_call.1} parent=1 // pred_check
      _
    $region3: #{tpu_custom_call.1} parent=1 // pred_check_branch
      %16 = sbr.rel (0) target = $region5
    $region4: #{tpu_custom_call.1} parent=1 // pred_region
      _
    $region5: #{tpu_custom_call.1} parent=1 // pred_fallthru
      _
    // Predicated region
    $region6: #{tpu_custom_call.1} parent=1 // pred_check
      _
    $region7: #{tpu_custom_call.1} parent=1 // pred_check_branch
      %18 = sbr.rel (0) target = $region9
    $region8: #{tpu_custom_call.1} parent=1 // pred_region
      %20 = vsyncadd [#allocation4], 0
      %s21 = sshll.u32 %s1, 4
      %s22 = int_to_ptr.hbm [resolvable:$true] %s21
      %s23 = sshll.u32 [#allocation3], 4
      %s24 = int_to_ptr.vmem [resolvable:$true] %s23
      %29 = dma.hbm_to_vmem [thread:$0]  %s22, 1024, %s24, [#allocation4], 64, 64, 4
    $region9: #{tpu_custom_call.1} parent=1 // pred_fallthru
      _
    // Predicated region
    $region10: #{tpu_custom_call.1} parent=1 // pred_check
      _
    $region11: #{tpu_custom_call.1} parent=1 // pred_check_branch
      %31 = sbr.rel (0) target = $region13
    $region12: #{tpu_custom_call.1} parent=1 // pred_region
      _
    $region13: #{tpu_custom_call.1} parent=1 // pred_fallthru
      _
    // Predicated region
    $region14: #{tpu_custom_call.1} parent=1 // pred_check
      _
    $region15: #{tpu_custom_call.1} parent=1 // pred_check_branch
      %33 = sbr.rel (0) target = $region17
    $region16: #{tpu_custom_call.1} parent=1 // pred_region
      %35 = vsyncadd [#allocation7], 0
      %s36 = sshll.u32 %s3, 4
      %s37 = int_to_ptr.hbm [resolvable:$true] %s36
      %s38 = sshll.u32 [#allocation6], 4
      %s39 = int_to_ptr.vmem [resolvable:$true] %s38
      %44 = dma.hbm_to_vmem [thread:$0]  %s37, 1024, %s39, [#allocation7], 64, 64, 4
    $region17: #{tpu_custom_call.1} parent=1 // pred_fallthru
      _
    // Predicated region
    $region18: #{tpu_custom_call.1} parent=1 // pred_check
      _
    $region19: #{tpu_custom_call.1} parent=1 // pred_check_branch
      %46 = sbr.rel (0) target = $region21
    $region20: #{tpu_custom_call.1} parent=1 // pred_region
      _
    $region21: #{tpu_custom_call.1} parent=1 // pred_fallthru
      _
    // Predicated region
    $region22: #{tpu_custom_call.1} parent=1 // pred_check
      _
    $region23: #{tpu_custom_call.1} parent=1 // pred_check_branch
      %48 = sbr.rel (0) target = $region25
    $region24: #{tpu_custom_call.1} parent=1 // pred_region
      _
    $region25: #{tpu_custom_call.1} parent=1 // pred_fallthru
      _
    // Predicated region
    $region26: #{tpu_custom_call.1} parent=1 // pred_check
      _
    $region27: #{tpu_custom_call.1} parent=1 // pred_check_branch
      %50 = sbr.rel (0) target = $region29
    $region28: #{tpu_custom_call.1} parent=1 // pred_region
      _
    $region29: #{tpu_custom_call.1} parent=1 // pred_fallthru
      _
    // Predicated region
    $region30: #{tpu_custom_call.1} parent=1 // pred_check
      _
    $region31: #{tpu_custom_call.1} parent=1 // pred_check_branch
      %52 = sbr.rel (0) target = $region33
    $region32: #{tpu_custom_call.1} parent=1 // pred_region
      %54 = dma.done [#allocation4], 1024
    $region33: #{tpu_custom_call.1} parent=1 // pred_fallthru
      _
    // Predicated region
    $region34: #{tpu_custom_call.1} parent=1 // pred_check
      _
    $region35: #{tpu_custom_call.1} parent=1 // pred_check_branch
      %56 = sbr.rel (0) target = $region37
    $region36: #{tpu_custom_call.1} parent=1 // pred_region
      %58 = dma.done [#allocation7], 1024
    $region37: #{tpu_custom_call.1} parent=1 // pred_fallthru
      _
    %p59 = scmp.eq.s32.totalorder 0, 0
    // Predicated region
    $region38: #{tpu_custom_call.1} parent=1 // pred_check
      %p60 = pneg %p59
    $region39: #{tpu_custom_call.1} parent=1 // pred_check_branch
      %62 = sbr.rel (%p60) target = $region41
    $region40: #{tpu_custom_call.1} parent=1 // pred_region
      %63 = vst [vmem:[#allocation2] sm:$0xff] 0.0
      %64 = vst [vmem:[#allocation2 + $0x8] sm:$0xff] 0.0
    $region41: #{tpu_custom_call.1} parent=1 // pred_fallthru
      _
    %v65 = vld [vmem:[%s0] sm:$0xf]
    %v66 = vld [vmem:[%s0 + $0x4] sm:$0xf]
    %v67 = vld [vmem:[#allocation3] sm:$0xf]
    %v68 = vld [vmem:[#allocation3 + $0x4] sm:$0xf]
    %v69 = vld [vmem:[#allocation3 + $0x8] sm:$0xf]
    %v70 = vld [vmem:[#allocation3 + $0xc] sm:$0xf]
    %v71 = vld [vmem:[#allocation3 + $0x10] sm:$0xf]
    %v72 = vld [vmem:[#allocation3 + $0x14] sm:$0xf]
    %v73 = vld [vmem:[#allocation3 + $0x18] sm:$0xf]
    %v74 = vld [vmem:[#allocation3 + $0x1c] sm:$0xf]
    %v75 = vld [vmem:[#allocation3 + $0x20] sm:$0xf]
    %v76 = vld [vmem:[#allocation3 + $0x24] sm:$0xf]
    %v77 = vld [vmem:[#allocation3 + $0x28] sm:$0xf]
    %v78 = vld [vmem:[#allocation3 + $0x2c] sm:$0xf]
    %v79 = vld [vmem:[#allocation3 + $0x30] sm:$0xf]
    %v80 = vld [vmem:[#allocation3 + $0x34] sm:$0xf]
    %v81 = vld [vmem:[#allocation3 + $0x38] sm:$0xf]
    %v82 = vld [vmem:[#allocation3 + $0x3c] sm:$0xf]
    %v83 = vld [vmem:[%s2] sm:$0x1]
    %v85 = vperm.slane %v83, 0
    %v89 = vunpack.c.l.b16 %v65
    %v90 = vunpack.c.l.b16 %v66
    %v91 = vpack.c.b16 %v90, %v89
    %v109 = vunpack.c.l.b16 %v67
    %v110 = vunpack.c.l.b16 %v68
    %v111 = vunpack.c.l.b16 %v69
    %v112 = vunpack.c.l.b16 %v70
    %v113 = vunpack.c.l.b16 %v71
    %v114 = vunpack.c.l.b16 %v72
    %v115 = vunpack.c.l.b16 %v73
    %v116 = vunpack.c.l.b16 %v74
    %v117 = vunpack.c.l.b16 %v75
    %v118 = vunpack.c.l.b16 %v76
    %v119 = vunpack.c.l.b16 %v77
    %v120 = vunpack.c.l.b16 %v78
    %v121 = vunpack.c.l.b16 %v79
    %v122 = vunpack.c.l.b16 %v80
    %v123 = vunpack.c.l.b16 %v81
    %v124 = vunpack.c.l.b16 %v82
    %v125 = vpack.c.b16 %v110, %v109
    %v126 = vpack.c.b16 %v112, %v111
    %v127 = vpack.c.b16 %v114, %v113
    %v128 = vpack.c.b16 %v116, %v115
    %v129 = vpack.c.b16 %v118, %v117
    %v130 = vpack.c.b16 %v120, %v119
    %v131 = vpack.c.b16 %v122, %v121
    %v132 = vpack.c.b16 %v124, %v123
    %141 = vmatpush.bf16.msra.mxu0 %v132
    %142 = vmatpush.bf16.msra.mxu0 %v131
    %143 = vmatpush.bf16.msra.mxu0 %v130
    %144 = vmatpush.bf16.msra.mxu0 %v129
    %145 = vmatpush.bf16.msra.mxu0 %v128
    %146 = vmatpush.bf16.msra.mxu0 %v127
    %147 = vmatpush.bf16.msra.mxu0 %v126
    %148 = vmatpush.bf16.msra.mxu0 %v125
    %149 = vmatmul.bf16.gmra.mxu0 %v91
    %v150 = vpop.f32.mrf.mxu0
    %v151 = vadd.f32 %v85, %v150
    %v152 = vpop.f32.mrf.mxu0
    %v153 = vadd.f32 %v85, %v152
    %154 = vdwg.mxu0
    %v155 = vmax.f32 %v151, 0.0
    %v156 = vmax.f32 %v153, 0.0
    %v157 = vld [vmem:[#allocation2] sm:$0xff]
    %v158 = vld [vmem:[#allocation2 + $0x8] sm:$0xff]
    %v159 = vpack.c.bf16 %v156, %v155
    %v160 = vld [vmem:[#allocation6] sm:$0xf]
    %v161 = vld [vmem:[#allocation6 + $0x4] sm:$0xf]
    %v162 = vld [vmem:[#allocation6 + $0x8] sm:$0xf]
    %v163 = vld [vmem:[#allocation6 + $0xc] sm:$0xf]
    %v164 = vld [vmem:[#allocation6 + $0x10] sm:$0xf]
    %v165 = vld [vmem:[#allocation6 + $0x14] sm:$0xf]
    %v166 = vld [vmem:[#allocation6 + $0x18] sm:$0xf]
    %v167 = vld [vmem:[#allocation6 + $0x1c] sm:$0xf]
    %v168 = vld [vmem:[#allocation6 + $0x20] sm:$0xf]
    %v169 = vld [vmem:[#allocation6 + $0x24] sm:$0xf]
    %v170 = vld [vmem:[#allocation6 + $0x28] sm:$0xf]
    %v171 = vld [vmem:[#allocation6 + $0x2c] sm:$0xf]
    %v172 = vld [vmem:[#allocation6 + $0x30] sm:$0xf]
    %v173 = vld [vmem:[#allocation6 + $0x34] sm:$0xf]
    %v174 = vld [vmem:[#allocation6 + $0x38] sm:$0xf]
    %v175 = vld [vmem:[#allocation6 + $0x3c] sm:$0xf]
    %v192 = vunpack.c.l.b16 %v160
    %v193 = vunpack.c.l.b16 %v161
    %v194 = vunpack.c.l.b16 %v162
    %v195 = vunpack.c.l.b16 %v163
    %v196 = vunpack.c.l.b16 %v164
    %v197 = vunpack.c.l.b16 %v165
    %v198 = vunpack.c.l.b16 %v166
    %v199 = vunpack.c.l.b16 %v167
    %v200 = vunpack.c.l.b16 %v168
    %v201 = vunpack.c.l.b16 %v169
    %v202 = vunpack.c.l.b16 %v170
    %v203 = vunpack.c.l.b16 %v171
    %v204 = vunpack.c.l.b16 %v172
    %v205 = vunpack.c.l.b16 %v173
    %v206 = vunpack.c.l.b16 %v174
    %v207 = vunpack.c.l.b16 %v175
    %v208 = vpack.c.b16 %v193, %v192
    %v209 = vpack.c.b16 %v195, %v194
    %v210 = vpack.c.b16 %v197, %v196
    %v211 = vpack.c.b16 %v199, %v198
    %v212 = vpack.c.b16 %v201, %v200
    %v213 = vpack.c.b16 %v203, %v202
    %v214 = vpack.c.b16 %v205, %v204
    %v215 = vpack.c.b16 %v207, %v206
    %224 = vmatpush.bf16.msra.mxu0 %v215
    %225 = vmatpush.bf16.msra.mxu0 %v214
    %226 = vmatpush.bf16.msra.mxu0 %v213
    %227 = vmatpush.bf16.msra.mxu0 %v212
    %228 = vmatpush.bf16.msra.mxu0 %v211
    %229 = vmatpush.bf16.msra.mxu0 %v210
    %230 = vmatpush.bf16.msra.mxu0 %v209
    %231 = vmatpush.bf16.msra.mxu0 %v208
    %232 = vmatmul.bf16.gmra.mxu0 %v159
    %v233 = vpop.f32.mrf.mxu0
    %v234 = vadd.f32 0.0, %v233
    %v235 = vpop.f32.mrf.mxu0
    %v236 = vadd.f32 0.0, %v235
    %237 = vdwg.mxu0
    %v238 = vadd.f32 %v157, %v234
    %v239 = vadd.f32 %v158, %v236
    %240 = vst [vmem:[#allocation2] sm:$0xff] %v238
    %241 = vst [vmem:[#allocation2 + $0x8] sm:$0xff] %v239
    // Predicated region
    $region42: #{tpu_custom_call.1} parent=1 // pred_check
      %p242 = pneg %p59
    $region43: #{tpu_custom_call.1} parent=1 // pred_check_branch
      %244 = sbr.rel (%p242) target = $region45
    $region44: #{tpu_custom_call.1} parent=1 // pred_region
      %v245 = vld [vmem:[%s6] sm:$0xff]
      %v246 = vld [vmem:[%s6 + $0x8] sm:$0xff]
      %v247 = vld [vmem:[#allocation2] sm:$0xff]
      %v248 = vld [vmem:[#allocation2 + $0x8] sm:$0xff]
      %250 = vset.pattern.permute.xlu0 0
      %251 = vperm.xlu0 %250, %v245
      %v252 = vpop.permute.xlu0 %251
      %255 = vset.pattern.permute.xlu0 0
      %256 = vperm.xlu0 %255, %v246
      %v257 = vpop.permute.xlu0 %256
      %v259 = vmul.f32 %v252, %v247
      %v260 = vmul.f32 %v257, %v248
      %v261 = vld [vmem:[%s5] sm:$0x1]
      %262 = vset.pattern.permute.xlu0 1
      %263 = vperm.xlu0 %262, %v245
      %v264 = vpop.permute.xlu0 %263
      %266 = vset.pattern.permute.xlu0 1
      %267 = vperm.xlu0 %266, %v246
      %v268 = vpop.permute.xlu0 %267
      %v271 = vperm.slane %v261, 0
      %v273 = vmul.f32 %v264, %v271
      %v274 = vmul.f32 %v268, %v271
      %v275 = vadd.f32 %v259, %v273
      %v276 = vadd.f32 %v260, %v274
      %v277 = vld [vmem:[%s4] sm:$0x1]
      %v279 = vperm.slane %v277, 0
      %v281 = vadd.f32 %v275, %v279
      %v282 = vadd.f32 %v276, %v279
      %283 = vst [vmem:[#allocation8] sm:$0xff] %v281
      %284 = vst [vmem:[#allocation8 + $0x8] sm:$0xff] %v282
    $region45: #{tpu_custom_call.1} parent=1 // pred_fallthru
      _
    // Predicated region
    $region46: #{tpu_custom_call.1} parent=1 // pred_check
      _
    $region47: #{tpu_custom_call.1} parent=1 // pred_check_branch
      %286 = sbr.rel (0) target = $region49
    $region48: #{tpu_custom_call.1} parent=1 // pred_region
      %288 = vsyncadd [#allocation5], 0
      %s289 = sshll.u32 [#allocation8], 4
      %s290 = int_to_ptr.vmem [resolvable:$true] %s289
      %s291 = sshll.u32 %s7, 4
      %s292 = int_to_ptr.hbm [resolvable:$true] %s291
      %297 = dma.vmem_to_hbm [thread:$0]  %s290, 256, %s292, [#allocation5], 128, 128, 8
    $region49: #{tpu_custom_call.1} parent=1 // pred_fallthru
      _
    // Predicated region
    $region50: #{tpu_custom_call.1} parent=1 // pred_check
      _
    $region51: #{tpu_custom_call.1} parent=1 // pred_check_branch
      %299 = sbr.rel (0) target = $region53
    $region52: #{tpu_custom_call.1} parent=1 // pred_region
      %301 = dma.done [#allocation5], 256
    $region53: #{tpu_custom_call.1} parent=1 // pred_fallthru
      _
    %302 = vsyncpa [#allocation4], 1
    %303 = vsyncpa [#allocation7], 1
    %304 = vsyncpa [#allocation5], 1

</llo_original>
